<compile_context>
chip_gen: v6e
topology: v6e:2x2x1
jax: 0.10.0
libtpu: 0.0.40
codegen_flags: <defaults>
</compile_context>

<pallas_src>
import functools

import jax
import jax.numpy as jnp
from jax.experimental import pallas as pl
from jax.experimental.pallas import tpu as pltpu

NEG_SLOPE = 0.01  # PyTorch nn.LeakyReLU default


def _round_up(a, b):
    return (a + b - 1) // b * b


def _cdiv(a, b):
    return -(-a // b)


def _leaky_relu(x):
    return jnp.where(x > 0, x, NEG_SLOPE * x)


def _mlp_kernel(x_ref, w1_ref, b1_ref, w2_ref, b2_ref, w3_ref, b3_ref, o_ref,
                *, compute_dtype):
    # x_ref: (tm, F)  w1: (F, F1)  w2: (F1, H1)  w3: (1, H1)  b3: (1,) in SMEM
    # o_ref: (1, tm)
    x = x_ref[...].astype(compute_dtype)
    h1 = jnp.dot(x, w1_ref[...], preferred_element_type=jnp.float32)
    h1 = _leaky_relu(h1 + b1_ref[...])                       # (tm, F1) f32
    h2 = jnp.dot(h1.astype(compute_dtype), w2_ref[...],
                 preferred_element_type=jnp.float32)
    h2 = _leaky_relu(h2 + b2_ref[...])                       # (tm, H1) f32
    # Final Linear(H1 -> 1): contract w3 (1, H1) with h2 (tm, H1) on their
    # last dims so the MXU emits a lane-dense (1, tm) row directly.
    out = jax.lax.dot_general(
        w3_ref[...], h2.astype(compute_dtype),
        dimension_numbers=(((1,), (1,)), ((), ())),
        preferred_element_type=jnp.float32)                  # (1, tm) f32
    o_ref[...] = (out + b3_ref[0]).astype(o_ref.dtype)


def _choose_tile(M, tm_request, vmem_max_tm):
    """Row tile: multiple of 128, within VMEM budget, grid>=2 & even if possible."""
    M128 = _round_up(M, 128)
    tm = max(128, min(_round_up(max(tm_request, 128), 128), vmem_max_tm, M128))
    grid = _cdiv(M128, tm)
    if grid == 1 and M128 >= 256:
        # Split so v7x's second TensorCore gets work (no effect on v5e/v6e).
        tm = _round_up(_cdiv(M128, 2), 128)
        grid = _cdiv(M128, tm)
    if grid > 1 and grid % 2 == 1:
        # Prefer an even grid (balanced across v7x's two TensorCores), but
        # don't shrink the tile so far that per-step overhead dominates.
        tm_even = _round_up(_cdiv(M128, grid + 1), 128)
        if tm_even >= 256 and _cdiv(M128, tm_even) % 2 == 0:
            tm = tm_even
    return tm


@functools.partial(jax.jit, static_argnames=("tm", "compute_dtype"))
def prediction_layer_s(embeddings, params, *, tm=1024, compute_dtype=jnp.bfloat16):
    """embeddings: (B, N, F) -> (B, N)."""
    B, N, F = embeddings.shape
    M = B * N
    out_dtype = embeddings.dtype

    w1, b1, w2, b2, w3, b3 = params
    H = w2.shape[1]                       # F // 2
    F1 = _round_up(F, 128)                # layer-1 output width (lane-filled)
    H1 = _round_up(H, 128)                # layer-2 output width (lane-filled)

    # Zero-pad *internal* widths only (exact: LeakyReLU(0)=0 and padded w2
    # rows / w3 lanes are zero).  The streamed x operand is never width-padded.
    w1p = jnp.pad(w1, ((0, 0), (0, F1 - F))).astype(compute_dtype)
    b1p = jnp.pad(b1, ((0, 0), (0, F1 - F))).astype(jnp.float32)
    w2p = jnp.pad(w2, ((0, F1 - F), (0, H1 - H))).astype(compute_dtype)
    b2p = jnp.pad(b2, ((0, 0), (0, H1 - H))).astype(jnp.float32)
    w3p = jnp.pad(w3.reshape(1, H), ((0, 0), (0, H1 - H))).astype(compute_dtype)
    b3p = b3.reshape(1).astype(jnp.float32)          # scalar bias -> SMEM

    x_itemsize = jnp.dtype(embeddings.dtype).itemsize
    w_itemsize = jnp.dtype(compute_dtype).itemsize

    # --- VMEM budget guard (v7x: 64 MiB physical, 48 MiB requested below) ---
    # Single-buffered resident weights + per-row streaming/activation cost.
    weight_bytes = (F * F1 + F1 * H1 + H1) * w_itemsize + (F1 + H1) * 4
    x_buffers = 3 if F >= 1024 else 2     # deeper x buffering once HBM-bound
    per_row_bytes = (x_buffers * F * x_itemsize            # x pipeline buffers
                     + (F1 + H1) * (4 + w_itemsize)        # f32 + cast activations
                     + 4 * 128)                            # slack
    vmem_budget = 40 * 1024 * 1024
    avail = max(vmem_budget - weight_bytes, per_row_bytes * 128)
    # TODO(synk): for very large F (resident weights alone > ~40 MiB, earliest
    # on v7x), add a K-tiling grid axis over F with a VMEM accumulator instead
    # of only shrinking tm.
    vmem_max_tm = max(128, (avail // per_row_bytes) // 128 * 128)

    tm = _choose_tile(M, tm, vmem_max_tm)

    # Stream x unpadded; Pallas masks the ragged final block (OOB rows only
    # affect OOB output columns, which are masked on store and sliced away).
    # Only tiny inputs (M < one tile) are padded, where the cost is negligible.
    x2 = embeddings.reshape(M, F)
    M_rows = M
    if M < tm:
        M_rows = tm
        x2 = jnp.pad(x2, ((0, M_rows - M), (0, 0)))
    grid = (_cdiv(M_rows, tm),)

    flops = 2 * M * (F * F + F * H + H)              # real (unpadded) work
    bytes_accessed = (
        M * F * x_itemsize                            # x stream (dominant)
        + M * jnp.dtype(out_dtype).itemsize           # output row
        + (F * F1 + F1 * H1 + H1) * w_itemsize        # weights (read once)
        + (F1 + H1 + 1) * 4)                          # biases (f32)

    kernel = functools.partial(_mlp_kernel, compute_dtype=compute_dtype)

    def resident(shape):
        # Grid-invariant block: index_map constant, single pipeline buffer.
        return pl.BlockSpec(shape, lambda i: (0, 0),
                            pipeline_mode=pl.Buffered(1))

    out = pl.pallas_call(
        kernel,
        out_shape=jax.ShapeDtypeStruct((1, M_rows), out_dtype),
        grid_spec=pltpu.PrefetchScalarGridSpec(
            num_scalar_prefetch=0,
            grid=grid,
            in_specs=[
                pl.BlockSpec((tm, F), lambda i: (i, 0),
                             pipeline_mode=pl.Buffered(x_buffers)),  # x rows
                resident((F, F1)),     # w1 (resident, single-buffered)
                resident((1, F1)),     # b1
                resident((F1, H1)),    # w2
                resident((1, H1)),     # b2
                resident((1, H1)),     # w3 (row form)
                pl.BlockSpec(memory_space=pltpu.MemorySpace.SMEM),   # b3 scalar
            ],
            out_specs=pl.BlockSpec((1, tm), lambda i: (0, i)),       # lane-dense
        ),
        compiler_params=pltpu.CompilerParams(
            dimension_semantics=("parallel",),       # shards grid across v7x TCs
            vmem_limit_bytes=48 * 1024 * 1024,
        ),
        cost_estimate=pl.CostEstimate(
            flops=flops, transcendentals=0, bytes_accessed=bytes_accessed),
    )(x2, w1p, b1p, w2p, b2p, w3p, b3p)

    return out.reshape(M_rows)[:M].reshape(B, N)


def init_params(key, embedding_dim):
    """Deterministic synthetic init matching nn.Linear shapes.

    Weights are stored as (in_features, out_features) = transpose of
    PyTorch's (out, in), so the kernel does x @ W + b.
    """
    F = embedding_dim
    H = F // 2
    k1, k2, k3, k4, k5, k6 = jax.random.split(key, 6)

    def uinit(k, shape, fan_in):
        bound = 1.0 / jnp.sqrt(fan_in)
        return jax.random.uniform(k, shape, jnp.float32, -bound, bound)

    w1 = uinit(k1, (F, F), F)
    b1 = uinit(k2, (1, F), F)
    w2 = uinit(k3, (F, H), F)
    b2 = uinit(k4, (1, H), F)
    w3 = uinit(k5, (H, 1), H)
    b3 = uinit(k6, (1, 1), H)
    return (w1, b1, w2, b2, w3, b3)


def reference(embeddings, params):
    w1, b1, w2, b2, w3, b3 = params
    hp = jax.lax.Precision.HIGHEST
    h = jax.nn.leaky_relu(jnp.dot(embeddings, w1, precision=hp) + b1, NEG_SLOPE)
    h = jax.nn.leaky_relu(jnp.dot(h, w2, precision=hp) + b2, NEG_SLOPE)
    o = jnp.dot(h, w3, precision=hp) + b3
    B, N, _ = embeddings.shape
    return o.reshape(B, N)


if __name__ == "__main__":
    key = jax.random.PRNGKey(0)

    def run_case(B, N, F):
        k_x, k_p = jax.random.split(jax.random.fold_in(key, B * 1000 + N))
        embeddings = jax.random.normal(k_x, (B, N, F), jnp.float32)
        params = init_params(k_p, F)
        ref = reference(embeddings, params)

        # Exact f32 compute path.
        out_f32 = prediction_layer_s(embeddings, params, compute_dtype=jnp.float32)
        jax.block_until_ready(out_f32)
        assert out_f32.shape == (B, N)
        assert jnp.allclose(out_f32, ref, atol=5e-3, rtol=5e-3), "f32 mismatch"

        # Default bf16-streaming path (looser tolerance from bf16 operands).
        out_bf16 = prediction_layer_s(embeddings, params)
        jax.block_until_ready(out_bf16)
        assert out_bf16.shape == (B, N)
        assert jnp.allclose(out_bf16, ref, atol=5e-2, rtol=5e-2), "bf16 mismatch"

    run_case(2, 8, 32)    # tiny M (single padded tile)
    run_case(3, 70, 32)   # M=210: even 2-step grid + ragged final block
    print("KERNEL_OK")
</pallas_src>

<mosaic_0001>
module attributes {stable_mosaic.version = 11 : i64} {
  func.func @_mlp_kernel(%arg0: i32, %arg1: memref<128x32xf32, #tpu.memory_space<vmem>>, %arg2: memref<32x128xf32, #tpu.memory_space<vmem>>, %arg3: memref<1x128xf32, #tpu.memory_space<vmem>>, %arg4: memref<128x128xf32, #tpu.memory_space<vmem>>, %arg5: memref<1x128xf32, #tpu.memory_space<vmem>>, %arg6: memref<1x128xf32, #tpu.memory_space<vmem>>, %arg7: memref<1xf32, #tpu.memory_space<smem>>, %arg8: memref<1x128xf32, #tpu.memory_space<vmem>>) attributes {dimension_semantics = [#tpu.dimension_semantics<parallel>], iteration_bounds = array<i64: 1>, scalar_prefetch = 0 : i64, scratch_operands = 0 : i64, tpu.core_type = #tpu.core_type<tc>, window_params = [{pipeline_mode = #tpu.pipeline_mode<double_buffered>, transform_indices = @transform_0, window_bounds = array<i64: 128, 32>}, {pipeline_mode = #tpu.pipeline_mode<synchronous>, transform_indices = @transform_1, window_bounds = array<i64: 32, 128>}, {pipeline_mode = #tpu.pipeline_mode<synchronous>, transform_indices = @transform_2, window_bounds = array<i64: 1, 128>}, {pipeline_mode = #tpu.pipeline_mode<synchronous>, transform_indices = @transform_3, window_bounds = array<i64: 128, 128>}, {pipeline_mode = #tpu.pipeline_mode<synchronous>, transform_indices = @transform_4, window_bounds = array<i64: 1, 128>}, {pipeline_mode = #tpu.pipeline_mode<synchronous>, transform_indices = @transform_5, window_bounds = array<i64: 1, 128>}, {transform_indices = @transform_6, window_bounds = array<i64: 1>}, {transform_indices = @transform_7, window_bounds = array<i64: 1, 128>}]} {
    %c0 = arith.constant 0 : index
    %c0_0 = arith.constant 0 : index
    %0 = vector.load %arg1[%c0, %c0_0] : memref<128x32xf32, #tpu.memory_space<vmem>>, vector<128x32xf32>
    %c0_1 = arith.constant 0 : index
    %c0_2 = arith.constant 0 : index
    %1 = vector.load %arg2[%c0_1, %c0_2] : memref<32x128xf32, #tpu.memory_space<vmem>>, vector<32x128xf32>
    %cst = arith.constant dense<0.000000e+00> : vector<128x128xf32>
    %2 = tpu.matmul %0, %1, %cst {dimension_numbers = #tpu.dot_dimension_numbers<[1], [0], [0], [1], [0, 0, 1, 1], [], []>} : vector<128x32xf32>, vector<32x128xf32>, vector<128x128xf32> -> vector<128x128xf32>
    %c0_3 = arith.constant 0 : index
    %c0_4 = arith.constant 0 : index
    %3 = vector.load %arg3[%c0_3, %c0_4] : memref<1x128xf32, #tpu.memory_space<vmem>>, vector<1x128xf32>
    %4 = vector.broadcast %3 : vector<1x128xf32> to vector<128x128xf32>
    %5 = arith.addf %2, %4 : vector<128x128xf32>
    %cst_5 = arith.constant 0.000000e+00 : f32
    %6 = vector.broadcast %cst_5 : f32 to vector<128x128xf32>
    %7 = arith.cmpf ogt, %5, %6 : vector<128x128xf32>
    %cst_6 = arith.constant 0.00999999977 : f32
    %8 = vector.broadcast %cst_6 : f32 to vector<128x128xf32>
    %9 = arith.mulf %8, %5 : vector<128x128xf32>
    %10 = arith.select %7, %5, %9 : vector<128x128xi1>, vector<128x128xf32>
    %c0_7 = arith.constant 0 : index
    %c0_8 = arith.constant 0 : index
    %11 = vector.load %arg4[%c0_7, %c0_8] : memref<128x128xf32, #tpu.memory_space<vmem>>, vector<128x128xf32>
    %cst_9 = arith.constant dense<0.000000e+00> : vector<128x128xf32>
    %12 = tpu.matmul %10, %11, %cst_9 {dimension_numbers = #tpu.dot_dimension_numbers<[1], [0], [0], [1], [0, 0, 1, 1], [], []>} : vector<128x128xf32>, vector<128x128xf32>, vector<128x128xf32> -> vector<128x128xf32>
    %c0_10 = arith.constant 0 : index
    %c0_11 = arith.constant 0 : index
    %13 = vector.load %arg5[%c0_10, %c0_11] : memref<1x128xf32, #tpu.memory_space<vmem>>, vector<1x128xf32>
    %14 = vector.broadcast %13 : vector<1x128xf32> to vector<128x128xf32>
    %15 = arith.addf %12, %14 : vector<128x128xf32>
    %cst_12 = arith.constant 0.000000e+00 : f32
    %16 = vector.broadcast %cst_12 : f32 to vector<128x128xf32>
    %17 = arith.cmpf ogt, %15, %16 : vector<128x128xf32>
    %cst_13 = arith.constant 0.00999999977 : f32
    %18 = vector.broadcast %cst_13 : f32 to vector<128x128xf32>
    %19 = arith.mulf %18, %15 : vector<128x128xf32>
    %20 = arith.select %17, %15, %19 : vector<128x128xi1>, vector<128x128xf32>
    %c0_14 = arith.constant 0 : index
    %c0_15 = arith.constant 0 : index
    %21 = vector.load %arg6[%c0_14, %c0_15] : memref<1x128xf32, #tpu.memory_space<vmem>>, vector<1x128xf32>
    %cst_16 = arith.constant dense<0.000000e+00> : vector<1x128xf32>
    %22 = tpu.matmul %21, %20, %cst_16 {dimension_numbers = #tpu.dot_dimension_numbers<[1], [1], [0], [0], [0, 0, 1, 0], [], []>} : vector<1x128xf32>, vector<128x128xf32>, vector<1x128xf32> -> vector<1x128xf32>
    %c0_17 = arith.constant 0 : index
    %23 = memref.load %arg7[%c0_17] : memref<1xf32, #tpu.memory_space<smem>>
    %24 = vector.broadcast %23 : f32 to vector<1x128xf32>
    %25 = arith.addf %22, %24 : vector<1x128xf32>
    %c0_18 = arith.constant 0 : index
    %c0_19 = arith.constant 0 : index
    %26 = vector.load %arg8[%c0_18, %c0_19] : memref<1x128xf32, #tpu.memory_space<vmem>>, vector<1x128xf32>
    tpu.vector_store %arg8[%c0_18, %c0_19], %25 {strides = array<i32>} : memref<1x128xf32, #tpu.memory_space<vmem>>, vector<1x128xf32>,
    return
  }
  func.func @transform_0(%arg0: i32) -> (i32, i32) {
    %c0_i32 = arith.constant 0 : i32
    %c0_i32_0 = arith.constant 0 : i32
    return %arg0, %c0_i32 : i32, i32
  }
  func.func @transform_1(%arg0: i32) -> (i32, i32) {
    %c0_i32 = arith.constant 0 : i32
    %c0_i32_0 = arith.constant 0 : i32
    %c0_i32_1 = arith.constant 0 : i32
    return %c0_i32, %c0_i32_0 : i32, i32
  }
  func.func @transform_2(%arg0: i32) -> (i32, i32) {
    %c0_i32 = arith.constant 0 : i32
    %c0_i32_0 = arith.constant 0 : i32
    %c0_i32_1 = arith.constant 0 : i32
    return %c0_i32, %c0_i32_0 : i32, i32
  }
  func.func @transform_3(%arg0: i32) -> (i32, i32) {
    %c0_i32 = arith.constant 0 : i32
    %c0_i32_0 = arith.constant 0 : i32
    %c0_i32_1 = arith.constant 0 : i32
    return %c0_i32, %c0_i32_0 : i32, i32
  }
  func.func @transform_4(%arg0: i32) -> (i32, i32) {
    %c0_i32 = arith.constant 0 : i32
    %c0_i32_0 = arith.constant 0 : i32
    %c0_i32_1 = arith.constant 0 : i32
    return %c0_i32, %c0_i32_0 : i32, i32
  }
  func.func @transform_5(%arg0: i32) -> (i32, i32) {
    %c0_i32 = arith.constant 0 : i32
    %c0_i32_0 = arith.constant 0 : i32
    %c0_i32_1 = arith.constant 0 : i32
    return %c0_i32, %c0_i32_0 : i32, i32
  }
  func.func @transform_6(%arg0: i32) -> i32 {
    %c0_i32 = arith.constant 0 : i32
    %c0_i32_0 = arith.constant 0 : i32
    return %c0_i32 : i32
  }
  func.func @transform_7(%arg0: i32) -> (i32, i32) {
    %c0_i32 = arith.constant 0 : i32
    %c0_i32_0 = arith.constant 0 : i32
    return %c0_i32, %arg0 : i32, i32
  }
}

</mosaic_0001>

<llo_original>
// kernel: prediction_layer_s.1
$region0: #{prediction_layer_s.1}
  #allocation0 [shape = 'u32[]', space=smem, size = 0x4, offset = 0x4, fixed_abs, tag = 'smem constant byte address 0x4 - core index']
  #allocation1 [shape = 'u32[144,128]{1,0:T(1,128)}', space=vmem, size = 0x12000, scoped, tag = 'internal scratch']
  #allocation2 [shape = 'f32[1]{0:T(128)S(6)}', space=smem, size = 0x200, scoped, tag = 'scoped memory for prediction_layer_s.1']
  %s0 = inlined_call_operand.vmem [shape: f32[128,32], index: 0, kind: input, shape index: {}]
  %s1 = inlined_call_operand.vmem [shape: f32[32,128], index: 1, kind: input, shape index: {}]
  %s2 = inlined_call_operand.vmem [shape: f32[1,128], index: 2, kind: input, shape index: {}]
  %s3 = inlined_call_operand.vmem [shape: f32[128,128], index: 3, kind: input, shape index: {}]
  %s4 = inlined_call_operand.vmem [shape: f32[1,128], index: 4, kind: input, shape index: {}]
  %s5 = inlined_call_operand.vmem [shape: f32[1,128], index: 5, kind: input, shape index: {}]
  %s6 = inlined_call_operand.<no memory space> [shape: f32[1], index: 6, kind: input, shape index: {}]
  %s7 = inlined_call_operand.vmem [shape: f32[1,128], index: 7, kind: output, shape index: {}]
  %s8 = sld [smem:[#allocation0]]
  $region38: #{prediction_layer_s.1} parent=0
    _
  %s10 = ssub.s32 1, %s8
  %s11 = scalar_select 0, %s10, %s8
  %12 = sst [smem:[#allocation2]] %s6
  // Predicated region
  $region2: #{prediction_layer_s.1} parent=0 // pred_check
    _
  $region3: #{prediction_layer_s.1} parent=0 // pred_check_branch
    %14 = sbr.rel (0) target = $region5
  $region4: #{prediction_layer_s.1} parent=0 // pred_region
    _
  $region5: #{prediction_layer_s.1} parent=0 // pred_fallthru
    _
  // Predicated region
  $region6: #{prediction_layer_s.1} parent=0 // pred_check
    _
  $region7: #{prediction_layer_s.1} parent=0 // pred_check_branch
    %16 = sbr.rel (0) target = $region9
  $region8: #{prediction_layer_s.1} parent=0 // pred_region
    _
  $region9: #{prediction_layer_s.1} parent=0 // pred_fallthru
    _
  // Predicated region
  $region10: #{prediction_layer_s.1} parent=0 // pred_check
    _
  $region11: #{prediction_layer_s.1} parent=0 // pred_check_branch
    %18 = sbr.rel (0) target = $region13
  $region12: #{prediction_layer_s.1} parent=0 // pred_region
    _
  $region13: #{prediction_layer_s.1} parent=0 // pred_fallthru
    _
  // Predicated region
  $region14: #{prediction_layer_s.1} parent=0 // pred_check
    _
  $region15: #{prediction_layer_s.1} parent=0 // pred_check_branch
    %20 = sbr.rel (0) target = $region17
  $region16: #{prediction_layer_s.1} parent=0 // pred_region
    _
  $region17: #{prediction_layer_s.1} parent=0 // pred_fallthru
    _
  // Predicated region
  $region18: #{prediction_layer_s.1} parent=0 // pred_check
    _
  $region19: #{prediction_layer_s.1} parent=0 // pred_check_branch
    %22 = sbr.rel (0) target = $region21
  $region20: #{prediction_layer_s.1} parent=0 // pred_region
    _
  $region21: #{prediction_layer_s.1} parent=0 // pred_fallthru
    _
  // Predicated region
  $region22: #{prediction_layer_s.1} parent=0 // pred_check
    _
  $region23: #{prediction_layer_s.1} parent=0 // pred_check_branch
    %24 = sbr.rel (0) target = $region25
  $region24: #{prediction_layer_s.1} parent=0 // pred_region
    _
  $region25: #{prediction_layer_s.1} parent=0 // pred_fallthru
    _
  // Predicated region
  $region26: #{prediction_layer_s.1} parent=0 // pred_check
    _
  $region27: #{prediction_layer_s.1} parent=0 // pred_check_branch
    %26 = sbr.rel (0) target = $region29
  $region28: #{prediction_layer_s.1} parent=0 // pred_region
    _
  $region29: #{prediction_layer_s.1} parent=0 // pred_fallthru
    _
  %v27 = vld [vmem:[%s0] sm:$0xff]
  %v28 = vld [vmem:[%s0 + $0x8] sm:$0xff]
  %v29 = vld [vmem:[%s0 + $0x10] sm:$0xff]
  %v30 = vld [vmem:[%s0 + $0x18] sm:$0xff]
  %v31 = vld [vmem:[%s0 + $0x20] sm:$0xff]
  %v32 = vld [vmem:[%s0 + $0x28] sm:$0xff]
  %v33 = vld [vmem:[%s0 + $0x30] sm:$0xff]
  %v34 = vld [vmem:[%s0 + $0x38] sm:$0xff]
  %v35 = vld [vmem:[%s0 + $0x40] sm:$0xff]
  %v36 = vld [vmem:[%s0 + $0x48] sm:$0xff]
  %v37 = vld [vmem:[%s0 + $0x50] sm:$0xff]
  %v38 = vld [vmem:[%s0 + $0x58] sm:$0xff]
  %v39 = vld [vmem:[%s0 + $0x60] sm:$0xff]
  %v40 = vld [vmem:[%s0 + $0x68] sm:$0xff]
  %v41 = vld [vmem:[%s0 + $0x70] sm:$0xff]
  %v42 = vld [vmem:[%s0 + $0x78] sm:$0xff]
  %v43 = vld [vmem:[%s1] sm:$0xff]
  %v44 = vld [vmem:[%s1 + $0x8] sm:$0xff]
  %v45 = vld [vmem:[%s1 + $0x10] sm:$0xff]
  %v46 = vld [vmem:[%s1 + $0x18] sm:$0xff]
  %v47 = vld [vmem:[%s2] sm:$0x1]
  %v49 = vlaneseq
  %v50 = vshrl.u32 %v49, 7
  %v51 = vsub.s32 0, %v50
  %v52 = vrot.slane %v47, %v51
  %vm54 = vcmask 261120
  %v56 = vsel %vm54, %v27, 0
  %v59 = vsel %vm54, %v28, 0
  %v62 = vsel %vm54, %v29, 0
  %v65 = vsel %vm54, %v30, 0
  %v68 = vsel %vm54, %v31, 0
  %v71 = vsel %vm54, %v32, 0
  %v74 = vsel %vm54, %v33, 0
  %v77 = vsel %vm54, %v34, 0
  %v80 = vsel %vm54, %v35, 0
  %v83 = vsel %vm54, %v36, 0
  %v86 = vsel %vm54, %v37, 0
  %v89 = vsel %vm54, %v38, 0
  %v92 = vsel %vm54, %v39, 0
  %v95 = vsel %vm54, %v40, 0
  %v98 = vsel %vm54, %v41, 0
  %v101 = vsel %vm54, %v42, 0
  %103 = vmatprep.subr.mxu0 0.0
  %104 = vmatpush1.msra.mxu0 0.0
  %105 = vmatprep.subr.mxu0 0.0
  %106 = vmatpush1.msra.mxu0 0.0
  %107 = vmatprep.subr.mxu0 0.0
  %108 = vmatpush1.msra.mxu0 0.0
  %109 = vmatprep.subr.mxu0 0.0
  %110 = vmatpush1.msra.mxu0 0.0
  %111 = vmatprep.subr.mxu0 0.0
  %112 = vmatpush1.msra.mxu0 0.0
  %113 = vmatprep.subr.mxu0 0.0
  %114 = vmatpush1.msra.mxu0 0.0
  %115 = vmatprep.subr.mxu0 0.0
  %116 = vmatpush1.msra.mxu0 0.0
  %117 = vmatprep.subr.mxu0 0.0
  %118 = vmatpush1.msra.mxu0 0.0
  %119 = vmatprep.subr.mxu0 0.0
  %120 = vmatpush1.msra.mxu0 0.0
  %121 = vmatprep.subr.mxu0 0.0
  %122 = vmatpush1.msra.mxu0 0.0
  %123 = vmatprep.subr.mxu0 0.0
  %124 = vmatpush1.msra.mxu0 0.0
  %125 = vmatprep.subr.mxu0 0.0
  %126 = vmatpush1.msra.mxu0 0.0
  %127 = vmatprep.subr.mxu0 0.0
  %128 = vmatpush1.msra.mxu0 %v46
  %129 = vmatprep.subr.mxu0 0.0
  %130 = vmatpush1.msra.mxu0 %v45
  %131 = vmatprep.subr.mxu0 0.0
  %132 = vmatpush1.msra.mxu0 %v44
  %133 = vmatprep.subr.mxu0 0.0
  %134 = vmatpush1.msra.mxu0 %v43
  %135 = vmatprep.subr.mxu0 0.0
  %136 = vmatpush2.msra.mxu0 0.0
  %137 = vmatprep.subr.mxu0 0.0
  %138 = vmatpush2.msra.mxu0 0.0
  %139 = vmatprep.subr.mxu0 0.0
  %140 = vmatpush2.msra.mxu0 0.0
  %141 = vmatprep.subr.mxu0 0.0
  %142 = vmatpush2.msra.mxu0 0.0
  %143 = vmatprep.subr.mxu0 0.0
  %144 = vmatpush2.msra.mxu0 0.0
  %145 = vmatprep.subr.mxu0 0.0
  %146 = vmatpush2.msra.mxu0 0.0
  %147 = vmatprep.subr.mxu0 0.0
  %148 = vmatpush2.msra.mxu0 0.0
  %149 = vmatprep.subr.mxu0 0.0
  %150 = vmatpush2.msra.mxu0 0.0
  %151 = vmatprep.subr.mxu0 0.0
  %152 = vmatpush2.msra.mxu0 0.0
  %153 = vmatprep.subr.mxu0 0.0
  %154 = vmatpush2.msra.mxu0 0.0
  %155 = vmatprep.subr.mxu0 0.0
  %156 = vmatpush2.msra.mxu0 0.0
  %157 = vmatprep.subr.mxu0 0.0
  %158 = vmatpush2.msra.mxu0 0.0
  %159 = vmatprep.subr.mxu0 0.0
  %160 = vmatpush2.msra.mxu0 0.0
  %161 = vmatprep.subr.mxu0 0.0
  %162 = vmatpush2.msra.mxu0 0.0
  %163 = vmatprep.subr.mxu0 0.0
  %164 = vmatpush2.msra.mxu0 0.0
  %165 = vmatprep.subr.mxu0 0.0
  %166 = vmatpush2.msra.mxu0 0.0
  %167 = vmatprep.mubr.f32.mxu0 0.0
  %168 = vmatmul.mubr.f32.gmra.mxu0 %v56
  %v169 = vpop.f32.mrf.mxu0
  %v170 = vadd.f32 %v52, %v169
  %v171 = vpop.f32.mrf.mxu0
  %172 = vmatprep.mubr.f32.mxu0 0.0
  %173 = vmatmul.mubr.f32.gmra.mxu0 %v59
  %v174 = vpop.f32.mrf.mxu0
  %v175 = vadd.f32 %v52, %v174
  %v176 = vpop.f32.mrf.mxu0
  %177 = vmatprep.mubr.f32.mxu0 0.0
  %178 = vmatmul.mubr.f32.gmra.mxu0 %v62
  %v179 = vpop.f32.mrf.mxu0
  %v180 = vadd.f32 %v52, %v179
  %v181 = vpop.f32.mrf.mxu0
  %182 = vmatprep.mubr.f32.mxu0 0.0
  %183 = vmatmul.mubr.f32.gmra.mxu0 %v65
  %v184 = vpop.f32.mrf.mxu0
  %v185 = vadd.f32 %v52, %v184
  %v186 = vpop.f32.mrf.mxu0
  %187 = vmatprep.mubr.f32.mxu0 0.0
  %188 = vmatmul.mubr.f32.gmra.mxu0 %v68
  %v189 = vpop.f32.mrf.mxu0
  %v190 = vadd.f32 %v52, %v189
  %v191 = vpop.f32.mrf.mxu0
  %192 = vmatprep.mubr.f32.mxu0 0.0
  %193 = vmatmul.mubr.f32.gmra.mxu0 %v71
  %v194 = vpop.f32.mrf.mxu0
  %v195 = vadd.f32 %v52, %v194
  %v196 = vpop.f32.mrf.mxu0
  %197 = vmatprep.mubr.f32.mxu0 0.0
  %198 = vmatmul.mubr.f32.gmra.mxu0 %v74
  %v199 = vpop.f32.mrf.mxu0
  %v200 = vadd.f32 %v52, %v199
  %v201 = vpop.f32.mrf.mxu0
  %202 = vmatprep.mubr.f32.mxu0 0.0
  %203 = vmatmul.mubr.f32.gmra.mxu0 %v77
  %v204 = vpop.f32.mrf.mxu0
  %v205 = vadd.f32 %v52, %v204
  %v206 = vpop.f32.mrf.mxu0
  %207 = vmatprep.mubr.f32.mxu0 0.0
  %208 = vmatmul.mubr.f32.gmra.mxu0 %v80
  %v209 = vpop.f32.mrf.mxu0
  %v210 = vadd.f32 %v52, %v209
  %v211 = vpop.f32.mrf.mxu0
  %212 = vmatprep.mubr.f32.mxu0 0.0
  %213 = vmatmul.mubr.f32.gmra.mxu0 %v83
  %v214 = vpop.f32.mrf.mxu0
  %v215 = vadd.f32 %v52, %v214
  %v216 = vpop.f32.mrf.mxu0
  %217 = vmatprep.mubr.f32.mxu0 0.0
  %218 = vmatmul.mubr.f32.gmra.mxu0 %v86
  %v219 = vpop.f32.mrf.mxu0
  %v220 = vadd.f32 %v52, %v219
  %v221 = vpop.f32.mrf.mxu0
  %222 = vmatprep.mubr.f32.mxu0 0.0
  %223 = vmatmul.mubr.f32.gmra.mxu0 %v89
  %v224 = vpop.f32.mrf.mxu0
  %v225 = vadd.f32 %v52, %v224
  %v226 = vpop.f32.mrf.mxu0
  %227 = vmatprep.mubr.f32.mxu0 0.0
  %228 = vmatmul.mubr.f32.gmra.mxu0 %v92
  %v229 = vpop.f32.mrf.mxu0
  %v230 = vadd.f32 %v52, %v229
  %v231 = vpop.f32.mrf.mxu0
  %232 = vmatprep.mubr.f32.mxu0 0.0
  %233 = vmatmul.mubr.f32.gmra.mxu0 %v95
  %v234 = vpop.f32.mrf.mxu0
  %v235 = vadd.f32 %v52, %v234
  %v236 = vpop.f32.mrf.mxu0
  %237 = vmatprep.mubr.f32.mxu0 0.0
  %238 = vmatmul.mubr.f32.gmra.mxu0 %v98
  %v239 = vpop.f32.mrf.mxu0
  %v240 = vadd.f32 %v52, %v239
  %v241 = vpop.f32.mrf.mxu0
  %242 = vmatprep.mubr.f32.mxu0 0.0
  %243 = vmatmul.mubr.f32.gmra.mxu0 %v101
  %v244 = vpop.f32.mrf.mxu0
  %v245 = vadd.f32 %v52, %v244
  %v246 = vpop.f32.mrf.mxu0
  %247 = vdwg.mxu0
  %vm248 = vcmp.gt.f32.partialorder %v170, 0.0
  %vm249 = vcmp.gt.f32.partialorder %v175, 0.0
  %vm250 = vcmp.gt.f32.partialorder %v180, 0.0
  %vm251 = vcmp.gt.f32.partialorder %v185, 0.0
  %vm252 = vcmp.gt.f32.partialorder %v190, 0.0
  %vm253 = vcmp.gt.f32.partialorder %v195, 0.0
  %vm254 = vcmp.gt.f32.partialorder %v200, 0.0
  %vm255 = vcmp.gt.f32.partialorder %v205, 0.0
  %vm256 = vcmp.gt.f32.partialorder %v210, 0.0
  %vm257 = vcmp.gt.f32.partialorder %v215, 0.0
  %vm258 = vcmp.gt.f32.partialorder %v220, 0.0
  %vm259 = vcmp.gt.f32.partialorder %v225, 0.0
  %vm260 = vcmp.gt.f32.partialorder %v230, 0.0
  %vm261 = vcmp.gt.f32.partialorder %v235, 0.0
  %vm262 = vcmp.gt.f32.partialorder %v240, 0.0
  %vm263 = vcmp.gt.f32.partialorder %v245, 0.0
  %v264 = vmul.f32 %v170, 0.01
  %v265 = vmul.f32 %v175, 0.01
  %v266 = vmul.f32 %v180, 0.01
  %v267 = vmul.f32 %v185, 0.01
  %v268 = vmul.f32 %v190, 0.01
  %v269 = vmul.f32 %v195, 0.01
  %v270 = vmul.f32 %v200, 0.01
  %v271 = vmul.f32 %v205, 0.01
  %v272 = vmul.f32 %v210, 0.01
  %v273 = vmul.f32 %v215, 0.01
  %v274 = vmul.f32 %v220, 0.01
  %v275 = vmul.f32 %v225, 0.01
  %v276 = vmul.f32 %v230, 0.01
  %v277 = vmul.f32 %v235, 0.01
  %v278 = vmul.f32 %v240, 0.01
  %v279 = vmul.f32 %v245, 0.01
  %v280 = vsel %vm248, %v170, %v264
  %v281 = vsel %vm249, %v175, %v265
  %v282 = vsel %vm250, %v180, %v266
  %v283 = vsel %vm251, %v185, %v267
  %v284 = vsel %vm252, %v190, %v268
  %v285 = vsel %vm253, %v195, %v269
  %v286 = vsel %vm254, %v200, %v270
  %v287 = vsel %vm255, %v205, %v271
  %v288 = vsel %vm256, %v210, %v272
  %v289 = vsel %vm257, %v215, %v273
  %v290 = vsel %vm258, %v220, %v274
  %v291 = vsel %vm259, %v225, %v275
  %v292 = vsel %vm260, %v230, %v276
  %v293 = vsel %vm261, %v235, %v277
  %v294 = vsel %vm262, %v240, %v278
  %v295 = vsel %vm263, %v245, %v279
  %v296 = vld [vmem:[%s3] sm:$0xff]
  %v297 = vld [vmem:[%s3 + $0x8] sm:$0xff]
  %v298 = vld [vmem:[%s3 + $0x10] sm:$0xff]
  %v299 = vld [vmem:[%s3 + $0x18] sm:$0xff]
  %v300 = vld [vmem:[%s3 + $0x20] sm:$0xff]
  %v301 = vld [vmem:[%s3 + $0x28] sm:$0xff]
  %v302 = vld [vmem:[%s3 + $0x30] sm:$0xff]
  %v303 = vld [vmem:[%s3 + $0x38] sm:$0xff]
  %v304 = vld [vmem:[%s3 + $0x40] sm:$0xff]
  %v305 = vld [vmem:[%s3 + $0x48] sm:$0xff]
  %v306 = vld [vmem:[%s3 + $0x50] sm:$0xff]
  %v307 = vld [vmem:[%s3 + $0x58] sm:$0xff]
  %v308 = vld [vmem:[%s3 + $0x60] sm:$0xff]
  %v309 = vld [vmem:[%s3 + $0x68] sm:$0xff]
  %v310 = vld [vmem:[%s3 + $0x70] sm:$0xff]
  %v311 = vld [vmem:[%s3 + $0x78] sm:$0xff]
  %v312 = vld [vmem:[%s4] sm:$0x1]
  %v314 = vlaneseq
  %v315 = vshrl.u32 %v314, 7
  %v316 = vsub.s32 0, %v315
  %v317 = vrot.slane %v312, %v316
  %319 = vmatprep.subr.mxu0 0.0
  %320 = vmatpush1.msra.mxu0 %v311
  %321 = vmatprep.subr.mxu0 0.0
  %322 = vmatpush1.msra.mxu0 %v310
  %323 = vmatprep.subr.mxu0 0.0
  %324 = vmatpush1.msra.mxu0 %v309
  %325 = vmatprep.subr.mxu0 0.0
  %326 = vmatpush1.msra.mxu0 %v308
  %327 = vmatprep.subr.mxu0 0.0
  %328 = vmatpush1.msra.mxu0 %v307
  %329 = vmatprep.subr.mxu0 0.0
  %330 = vmatpush1.msra.mxu0 %v306
  %331 = vmatprep.subr.mxu0 0.0
  %332 = vmatpush1.msra.mxu0 %v305
  %333 = vmatprep.subr.mxu0 0.0
  %334 = vmatpush1.msra.mxu0 %v304
  %335 = vmatprep.subr.mxu0 0.0
  %336 = vmatpush1.msra.mxu0 %v303
  %337 = vmatprep.subr.mxu0 0.0
  %338 = vmatpush1.msra.mxu0 %v302
  %339 = vmatprep.subr.mxu0 0.0
  %340 = vmatpush1.msra.mxu0 %v301
  %341 = vmatprep.subr.mxu0 0.0
  %342 = vmatpush1.msra.mxu0 %v300
  %343 = vmatprep.subr.mxu0 0.0
  %344 = vmatpush1.msra.mxu0 %v299
  %345 = vmatprep.subr.mxu0 0.0
  %346 = vmatpush1.msra.mxu0 %v298
  %347 = vmatprep.subr.mxu0 0.0
  %348 = vmatpush1.msra.mxu0 %v297
  %349 = vmatprep.subr.mxu0 0.0
  %350 = vmatpush1.msra.mxu0 %v296
  %351 = vmatprep.subr.mxu0 0.0
  %352 = vmatpush2.msra.mxu0 0.0
  %353 = vmatprep.subr.mxu0 0.0
  %354 = vmatpush2.msra.mxu0 0.0
  %355 = vmatprep.subr.mxu0 0.0
  %356 = vmatpush2.msra.mxu0 0.0
  %357 = vmatprep.subr.mxu0 0.0
  %358 = vmatpush2.msra.mxu0 0.0
  %359 = vmatprep.subr.mxu0 0.0
  %360 = vmatpush2.msra.mxu0 0.0
  %361 = vmatprep.subr.mxu0 0.0
  %362 = vmatpush2.msra.mxu0 0.0
  %363 = vmatprep.subr.mxu0 0.0
  %364 = vmatpush2.msra.mxu0 0.0
  %365 = vmatprep.subr.mxu0 0.0
  %366 = vmatpush2.msra.mxu0 0.0
  %367 = vmatprep.subr.mxu0 0.0
  %368 = vmatpush2.msra.mxu0 0.0
  %369 = vmatprep.subr.mxu0 0.0
  %370 = vmatpush2.msra.mxu0 0.0
  %371 = vmatprep.subr.mxu0 0.0
  %372 = vmatpush2.msra.mxu0 0.0
  %373 = vmatprep.subr.mxu0 0.0
  %374 = vmatpush2.msra.mxu0 0.0
  %375 = vmatprep.subr.mxu0 0.0
  %376 = vmatpush2.msra.mxu0 0.0
  %377 = vmatprep.subr.mxu0 0.0
  %378 = vmatpush2.msra.mxu0 0.0
  %379 = vmatprep.subr.mxu0 0.0
  %380 = vmatpush2.msra.mxu0 0.0
  %381 = vmatprep.subr.mxu0 0.0
  %382 = vmatpush2.msra.mxu0 0.0
  %383 = vmatprep.mubr.f32.mxu0 0.0
  %384 = vmatmul.mubr.f32.gmra.mxu0 %v280
  %v385 = vpop.f32.mrf.mxu0
  %v386 = vadd.f32 %v317, %v385
  %v387 = vpop.f32.mrf.mxu0
  %388 = vmatprep.mubr.f32.mxu0 0.0
  %389 = vmatmul.mubr.f32.gmra.mxu0 %v281
  %v390 = vpop.f32.mrf.mxu0
  %v391 = vadd.f32 %v317, %v390
  %v392 = vpop.f32.mrf.mxu0
  %393 = vmatprep.mubr.f32.mxu0 0.0
  %394 = vmatmul.mubr.f32.gmra.mxu0 %v282
  %v395 = vpop.f32.mrf.mxu0
  %v396 = vadd.f32 %v317, %v395
  %v397 = vpop.f32.mrf.mxu0
  %398 = vmatprep.mubr.f32.mxu0 0.0
  %399 = vmatmul.mubr.f32.gmra.mxu0 %v283
  %v400 = vpop.f32.mrf.mxu0
  %v401 = vadd.f32 %v317, %v400
  %v402 = vpop.f32.mrf.mxu0
  %403 = vmatprep.mubr.f32.mxu0 0.0
  %404 = vmatmul.mubr.f32.gmra.mxu0 %v284
  %v405 = vpop.f32.mrf.mxu0
  %v406 = vadd.f32 %v317, %v405
  %v407 = vpop.f32.mrf.mxu0
  %408 = vmatprep.mubr.f32.mxu0 0.0
  %409 = vmatmul.mubr.f32.gmra.mxu0 %v285
  %v410 = vpop.f32.mrf.mxu0
  %v411 = vadd.f32 %v317, %v410
  %v412 = vpop.f32.mrf.mxu0
  %413 = vmatprep.mubr.f32.mxu0 0.0
  %414 = vmatmul.mubr.f32.gmra.mxu0 %v286
  %v415 = vpop.f32.mrf.mxu0
  %v416 = vadd.f32 %v317, %v415
  %v417 = vpop.f32.mrf.mxu0
  %418 = vmatprep.mubr.f32.mxu0 0.0
  %419 = vmatmul.mubr.f32.gmra.mxu0 %v287
  %v420 = vpop.f32.mrf.mxu0
  %v421 = vadd.f32 %v317, %v420
  %v422 = vpop.f32.mrf.mxu0
  %423 = vmatprep.mubr.f32.mxu0 0.0
  %424 = vmatmul.mubr.f32.gmra.mxu0 %v288
  %v425 = vpop.f32.mrf.mxu0
  %v426 = vadd.f32 %v317, %v425
  %v427 = vpop.f32.mrf.mxu0
  %428 = vmatprep.mubr.f32.mxu0 0.0
  %429 = vmatmul.mubr.f32.gmra.mxu0 %v289
  %v430 = vpop.f32.mrf.mxu0
  %v431 = vadd.f32 %v317, %v430
  %v432 = vpop.f32.mrf.mxu0
  %433 = vmatprep.mubr.f32.mxu0 0.0
  %434 = vmatmul.mubr.f32.gmra.mxu0 %v290
  %v435 = vpop.f32.mrf.mxu0
  %v436 = vadd.f32 %v317, %v435
  %v437 = vpop.f32.mrf.mxu0
  %438 = vmatprep.mubr.f32.mxu0 0.0
  %439 = vmatmul.mubr.f32.gmra.mxu0 %v291
  %v440 = vpop.f32.mrf.mxu0
  %v441 = vadd.f32 %v317, %v440
  %v442 = vpop.f32.mrf.mxu0
  %443 = vmatprep.mubr.f32.mxu0 0.0
  %444 = vmatmul.mubr.f32.gmra.mxu0 %v292
  %v445 = vpop.f32.mrf.mxu0
  %v446 = vadd.f32 %v317, %v445
  %v447 = vpop.f32.mrf.mxu0
  %448 = vmatprep.mubr.f32.mxu0 0.0
  %449 = vmatmul.mubr.f32.gmra.mxu0 %v293
  %v450 = vpop.f32.mrf.mxu0
  %v451 = vadd.f32 %v317, %v450
  %v452 = vpop.f32.mrf.mxu0
  %453 = vmatprep.mubr.f32.mxu0 0.0
  %454 = vmatmul.mubr.f32.gmra.mxu0 %v294
  %v455 = vpop.f32.mrf.mxu0
  %v456 = vadd.f32 %v317, %v455
  %v457 = vpop.f32.mrf.mxu0
  %458 = vmatprep.mubr.f32.mxu0 0.0
  %459 = vmatmul.mubr.f32.gmra.mxu0 %v295
  %v460 = vpop.f32.mrf.mxu0
  %v461 = vadd.f32 %v317, %v460
  %v462 = vpop.f32.mrf.mxu0
  %463 = vdwg.mxu0
  %vm464 = vcmp.gt.f32.partialorder %v386, 0.0
  %vm465 = vcmp.gt.f32.partialorder %v391, 0.0
  %vm466 = vcmp.gt.f32.partialorder %v396, 0.0
  %vm467 = vcmp.gt.f32.partialorder %v401, 0.0
  %vm468 = vcmp.gt.f32.partialorder %v406, 0.0
  %vm469 = vcmp.gt.f32.partialorder %v411, 0.0
  %vm470 = vcmp.gt.f32.partialorder %v416, 0.0
  %vm471 = vcmp.gt.f32.partialorder %v421, 0.0
  %vm472 = vcmp.gt.f32.partialorder %v426, 0.0
  %vm473 = vcmp.gt.f32.partialorder %v431, 0.0
  %vm474 = vcmp.gt.f32.partialorder %v436, 0.0
  %vm475 = vcmp.gt.f32.partialorder %v441, 0.0
  %vm476 = vcmp.gt.f32.partialorder %v446, 0.0
  %vm477 = vcmp.gt.f32.partialorder %v451, 0.0
  %vm478 = vcmp.gt.f32.partialorder %v456, 0.0
  %vm479 = vcmp.gt.f32.partialorder %v461, 0.0
  %v480 = vmul.f32 %v386, 0.01
  %v481 = vmul.f32 %v391, 0.01
  %v482 = vmul.f32 %v396, 0.01
  %v483 = vmul.f32 %v401, 0.01
  %v484 = vmul.f32 %v406, 0.01
  %v485 = vmul.f32 %v411, 0.01
  %v486 = vmul.f32 %v416, 0.01
  %v487 = vmul.f32 %v421, 0.01
  %v488 = vmul.f32 %v426, 0.01
  %v489 = vmul.f32 %v431, 0.01
  %v490 = vmul.f32 %v436, 0.01
  %v491 = vmul.f32 %v441, 0.01
  %v492 = vmul.f32 %v446, 0.01
  %v493 = vmul.f32 %v451, 0.01
  %v494 = vmul.f32 %v456, 0.01
  %v495 = vmul.f32 %v461, 0.01
  %v496 = vsel %vm464, %v386, %v480
  %v497 = vsel %vm465, %v391, %v481
  %v498 = vsel %vm466, %v396, %v482
  %v499 = vsel %vm467, %v401, %v483
  %v500 = vsel %vm468, %v406, %v484
  %v501 = vsel %vm469, %v411, %v485
  %v502 = vsel %vm470, %v416, %v486
  %v503 = vsel %vm471, %v421, %v487
  %v504 = vsel %vm472, %v426, %v488
  %v505 = vsel %vm473, %v431, %v489
  %v506 = vsel %vm474, %v436, %v490
  %v507 = vsel %vm475, %v441, %v491
  %v508 = vsel %vm476, %v446, %v492
  %v509 = vsel %vm477, %v451, %v493
  %v510 = vsel %vm478, %v456, %v494
  %v511 = vsel %vm479, %v461, %v495
  %v512 = vld [vmem:[%s5] sm:$0x1]
  %s513 = sld [smem:[#allocation2]]
  %v514 = vstv %s513
  %515 = vmatprep.subr.mxu0 0.0
  %516 = vmatpush1.xpose.msra.mxu0 %v511
  %517 = vmatprep.subr.mxu0 0.0
  %518 = vmatpush1.xpose.msra.mxu0 %v510
  %519 = vmatprep.subr.mxu0 0.0
  %520 = vmatpush1.xpose.msra.mxu0 %v509
  %521 = vmatprep.subr.mxu0 0.0
  %522 = vmatpush1.xpose.msra.mxu0 %v508
  %523 = vmatprep.subr.mxu0 0.0
  %524 = vmatpush1.xpose.msra.mxu0 %v507
  %525 = vmatprep.subr.mxu0 0.0
  %526 = vmatpush1.xpose.msra.mxu0 %v506
  %527 = vmatprep.subr.mxu0 0.0
  %528 = vmatpush1.xpose.msra.mxu0 %v505
  %529 = vmatprep.subr.mxu0 0.0
  %530 = vmatpush1.xpose.msra.mxu0 %v504
  %531 = vmatprep.subr.mxu0 0.0
  %532 = vmatpush1.xpose.msra.mxu0 %v503
  %533 = vmatprep.subr.mxu0 0.0
  %534 = vmatpush1.xpose.msra.mxu0 %v502
  %535 = vmatprep.subr.mxu0 0.0
  %536 = vmatpush1.xpose.msra.mxu0 %v501
  %537 = vmatprep.subr.mxu0 0.0
  %538 = vmatpush1.xpose.msra.mxu0 %v500
  %539 = vmatprep.subr.mxu0 0.0
  %540 = vmatpush1.xpose.msra.mxu0 %v499
  %541 = vmatprep.subr.mxu0 0.0
  %542 = vmatpush1.xpose.msra.mxu0 %v498
  %543 = vmatprep.subr.mxu0 0.0
  %544 = vmatpush1.xpose.msra.mxu0 %v497
  %545 = vmatprep.subr.mxu0 0.0
  %546 = vmatpush1.xpose.msra.mxu0 %v496
  %547 = vmatprep.subr.mxu0 0.0
  %548 = vmatpush2.xpose.msra.mxu0 0.0
  %549 = vmatprep.subr.mxu0 0.0
  %550 = vmatpush2.xpose.msra.mxu0 0.0
  %551 = vmatprep.subr.mxu0 0.0
  %552 = vmatpush2.xpose.msra.mxu0 0.0
  %553 = vmatprep.subr.mxu0 0.0
  %554 = vmatpush2.xpose.msra.mxu0 0.0
  %555 = vmatprep.subr.mxu0 0.0
  %556 = vmatpush2.xpose.msra.mxu0 0.0
  %557 = vmatprep.subr.mxu0 0.0
  %558 = vmatpush2.xpose.msra.mxu0 0.0
  %559 = vmatprep.subr.mxu0 0.0
  %560 = vmatpush2.xpose.msra.mxu0 0.0
  %561 = vmatprep.subr.mxu0 0.0
  %562 = vmatpush2.xpose.msra.mxu0 0.0
  %563 = vmatprep.subr.mxu0 0.0
  %564 = vmatpush2.xpose.msra.mxu0 0.0
  %565 = vmatprep.subr.mxu0 0.0
  %566 = vmatpush2.xpose.msra.mxu0 0.0
  %567 = vmatprep.subr.mxu0 0.0
  %568 = vmatpush2.xpose.msra.mxu0 0.0
  %569 = vmatprep.subr.mxu0 0.0
  %570 = vmatpush2.xpose.msra.mxu0 0.0
  %571 = vmatprep.subr.mxu0 0.0
  %572 = vmatpush2.xpose.msra.mxu0 0.0
  %573 = vmatprep.subr.mxu0 0.0
  %574 = vmatpush2.xpose.msra.mxu0 0.0
  %575 = vmatprep.subr.mxu0 0.0
  %576 = vmatpush2.xpose.msra.mxu0 0.0
  %577 = vmatprep.subr.mxu0 0.0
  %578 = vmatpush2.xpose.msra.mxu0 0.0
  %579 = vmatprep.mubr.f32.mxu0 0.0
  %580 = vmatmul.mubr.f32.gmra.mxu0 %v512
  %v581 = vpop.f32.mrf.mxu0
  %v582 = vadd.f32 %v514, %v581
  %v583 = vpop.f32.mrf.mxu0
  %584 = vdwg.mxu0
  %585 = vst [vmem:[%s7] sm:$0x1] %v582
  // Predicated region
  $region30: #{prediction_layer_s.1} parent=0 // pred_check
    _
  $region31: #{prediction_layer_s.1} parent=0 // pred_check_branch
    %587 = sbr.rel (0) target = $region33
  $region32: #{prediction_layer_s.1} parent=0 // pred_region
    _
  $region33: #{prediction_layer_s.1} parent=0 // pred_fallthru
    _
  // Predicated region
  $region34: #{prediction_layer_s.1} parent=0 // pred_check
    _
  $region35: #{prediction_layer_s.1} parent=0 // pred_check_branch
    %589 = sbr.rel (0) target = $region37
  $region36: #{prediction_layer_s.1} parent=0 // pred_region
    _
  $region37: #{prediction_layer_s.1} parent=0 // pred_fallthru
    _

</llo_original>
